<compile_context>
chip_gen: v7x
topology: tpu7x:2x2x1
jax: 0.10.0
libtpu: 0.0.40
codegen_flags: <defaults>
</compile_context>

<pallas_src>
import functools

import jax
import jax.numpy as jnp
import numpy as np
from jax import lax
from jax.experimental import pallas as pl
from jax.experimental.pallas import tpu as pltpu


def _round_up(x, m):
    return (x + m - 1) // m * m


def _contrastive_loss_kernel(f_ref, ft_ref, labc_ref, labr_ref,
                             out_ref,
                             exp_acc, pos_logit_acc, pos_cnt_acc,
                             *, inv_temperature, bs, tn):
    # f_ref:    (TM, D_pad)   feature row block (resident across the j axis)
    # ft_ref:   (D_pad, TN)   pre-transposed feature column block
    # labc_ref: (TM, 1)       labels column
    # labr_ref: (1, TN)       labels row
    # out_ref:  (TM, 1)       -mean_log_prob_pos per row (resident across the j axis)
    j = pl.program_id(1)

    @pl.when(j == 0)
    def _():
        exp_acc[...] = jnp.zeros_like(exp_acc)
        pos_logit_acc[...] = jnp.zeros_like(pos_logit_acc)
        pos_cnt_acc[...] = jnp.zeros_like(pos_cnt_acc)

    # Gram tile on the MXU; operands in their native dtype, f32 accumulate.
    sim = jnp.dot(f_ref[...], ft_ref[...], preferred_element_type=jnp.float32)
    logits = sim * inv_temperature                       # multiply, not divide

    # Column-validity mask for padded columns, computed from a static iota.
    col = j * tn + lax.broadcasted_iota(jnp.int32, (1, tn), 1)
    valid = col < bs                                     # (1, TN)

    eq = labc_ref[...] == labr_ref[...]                  # (TM, TN) compare
    pos = jnp.logical_and(eq, valid)                     # positives (incl. self, per spec)
    neg = jnp.logical_and(jnp.logical_not(eq), valid)    # denominator terms

    vals_exp = jnp.where(neg, jnp.exp(logits), 0.0)
    vals_pl = jnp.where(pos, logits, 0.0)
    vals_pc = jnp.where(pos, 1.0, 0.0)

    def fold(v):
        # Lane-aligned static slices (free vreg picks) + VALU adds: defer the
        # cross-lane (XLU) reduction to the finalize phase.
        r = v[:, 0:128]
        for c in range(1, tn // 128):
            r = r + v[:, c * 128:(c + 1) * 128]
        return r

    exp_acc[...] += fold(vals_exp)
    pos_logit_acc[...] += fold(vals_pl)
    pos_cnt_acc[...] += fold(vals_pc)

    @pl.when(j == pl.num_programs(1) - 1)
    def _():
        denom = jnp.sum(exp_acc[...], axis=1, keepdims=True)
        pos_logit = jnp.sum(pos_logit_acc[...], axis=1, keepdims=True)
        pos_cnt = jnp.sum(pos_cnt_acc[...], axis=1, keepdims=True)
        # sum_j mask*(logits - log_denom) = sum_j(mask*logits) - log_denom * sum_j(mask)
        # TODO(synk): no row-max (LSE) stabilization — matches the reference exactly.
        log_denom = jnp.log(denom)
        num = pos_logit - log_denom * pos_cnt
        out_ref[...] = -(num * pl.reciprocal(pos_cnt, approx=False))


def _pick_tiles(bs_pad, d_pad):
    tm = 256 if bs_pad % 256 == 0 else 128
    tn = 512 if bs_pad % 512 == 0 else (256 if bs_pad % 256 == 0 else 128)

    def footprint(tm_, tn_):
        # double-buffered feature blocks + accumulator scratch (f32 bytes)
        return 4 * 2 * (tm_ * d_pad + d_pad * tn_) + 4 * 3 * tm_ * 128

    budget = 12 * 1024 * 1024
    while footprint(tm, tn) > budget and tn > 128:
        tn //= 2
    while footprint(tm, tn) > budget and tm > 128:
        tm //= 2
    # TODO(synk): tile the feature (K) dim as a third grid axis for very large feature_dim.
    return tm, tn


def contrastive_loss(features, labels, temperature=0.5):
    """features: (bs, feature_dim); labels: (bs,). Returns scalar f32 loss."""
    bs, d = features.shape

    if jnp.issubdtype(labels.dtype, jnp.integer):
        labels = labels.astype(jnp.int32)      # integer compare (no float collisions)
    else:
        labels = labels.astype(jnp.float32)

    bs_pad = _round_up(bs, 128)
    d_pad = _round_up(d, 128)
    tm, tn = _pick_tiles(bs_pad, d_pad)

    f = jnp.pad(features, ((0, bs_pad - bs), (0, d_pad - d)))
    ft = f.T                                   # pre-transposed copy (layout plumbing in wrapper)

    lab_pad = jnp.pad(labels, (0, bs_pad - bs))
    lab_col = lab_pad.reshape(bs_pad, 1)
    lab_row = lab_pad.reshape(1, bs_pad)

    kernel = functools.partial(
        _contrastive_loss_kernel,
        inv_temperature=1.0 / float(temperature),
        bs=bs, tn=tn)

    grid = (bs_pad // tm, bs_pad // tn)
    per_row = pl.pallas_call(
        kernel,
        out_shape=jax.ShapeDtypeStruct((bs_pad, 1), jnp.float32),
        grid_spec=pltpu.PrefetchScalarGridSpec(
            num_scalar_prefetch=0,
            grid=grid,
            in_specs=[
                pl.BlockSpec((tm, d_pad), lambda i, j: (i, 0)),  # feature rows
                pl.BlockSpec((d_pad, tn), lambda i, j: (0, j)),  # feature cols (pre-T)
                pl.BlockSpec((tm, 1), lambda i, j: (i, 0)),      # labels column
                pl.BlockSpec((1, tn), lambda i, j: (0, j)),      # labels row
            ],
            out_specs=pl.BlockSpec((tm, 1), lambda i, j: (i, 0)),
            scratch_shapes=[pltpu.VMEM((tm, 128), jnp.float32)] * 3,
        ),
        compiler_params=pltpu.CompilerParams(
            dimension_semantics=("parallel", "arbitrary")),
    )(f, ft, lab_col, lab_row)

    # Tiny epilogue: mean over the real rows (padded rows sliced off), 1/bs folded
    # to a constant multiply. Kept outside the kernel so the row axis stays parallel.
    return jnp.sum(per_row[:bs, 0]) * (1.0 / bs)


def _reference_loss(features, labels, temperature=0.5):
    sim = features @ features.T
    lab = labels[:, None]
    mask = (lab == lab.T).astype(jnp.float32)
    logits = sim / temperature
    exp_logits = jnp.exp(logits) * (1.0 - mask)
    log_prob = logits - jnp.log(exp_logits.sum(1, keepdims=True))
    mean_log_prob_pos = (mask * log_prob).sum(1) / mask.sum(1)
    return -mean_log_prob_pos.mean()


if __name__ == "__main__":
    key = jax.random.PRNGKey(0)
    k_feat, k_lab = jax.random.split(key)

    bs, feature_dim = 8, 32
    features = jax.random.normal(k_feat, (bs, feature_dim), dtype=jnp.float32)
    # L2-normalize (typical contrastive-feature input; deterministic glue)
    features = features / jnp.linalg.norm(features, axis=1, keepdims=True)
    labels = jax.random.randint(k_lab, (bs,), 0, 3, dtype=jnp.int32)

    loss = contrastive_loss(features, labels, temperature=0.5)
    loss = jax.block_until_ready(loss)

    ref = _reference_loss(features, labels, temperature=0.5)
    assert np.allclose(np.asarray(loss), np.asarray(ref), rtol=1e-4, atol=1e-4), (
        f"mismatch: pallas={loss} ref={ref}"
    )
    print("KERNEL_OK")
</pallas_src>

<mosaic_0001>
module attributes {stable_mosaic.version = 11 : i64} {
  func.func @_contrastive_loss_kernel(%arg0: i32, %arg1: i32, %arg2: memref<128x128xf32, #tpu.memory_space<vmem>>, %arg3: memref<128x128xf32, #tpu.memory_space<vmem>>, %arg4: memref<128x1xi32, #tpu.memory_space<vmem>>, %arg5: memref<1x128xi32, #tpu.memory_space<vmem>>, %arg6: memref<128x1xf32, #tpu.memory_space<vmem>>, %arg7: memref<128x128xf32, #tpu.memory_space<vmem>>, %arg8: memref<128x128xf32, #tpu.memory_space<vmem>>, %arg9: memref<128x128xf32, #tpu.memory_space<vmem>>) attributes {dimension_semantics = [#tpu.dimension_semantics<parallel>, #tpu.dimension_semantics<arbitrary>], iteration_bounds = array<i64: 1, 1>, scalar_prefetch = 0 : i64, scratch_operands = 3 : i64, tpu.core_type = #tpu.core_type<tc>, window_params = [{transform_indices = @transform_0, window_bounds = array<i64: 128, 128>}, {transform_indices = @transform_1, window_bounds = array<i64: 128, 128>}, {transform_indices = @transform_2, window_bounds = array<i64: 128, 1>}, {transform_indices = @transform_3, window_bounds = array<i64: 1, 128>}, {transform_indices = @transform_4, window_bounds = array<i64: 128, 1>}]} {
    %c0_i32 = arith.constant 0 : i32
    %0 = arith.cmpi eq, %arg1, %c0_i32 : i32
    %1 = arith.extui %0 : i1 to i32
    %c0_i32_0 = arith.constant 0 : i32
    %2 = arith.cmpi ne, %1, %c0_i32_0 : i32
    scf.if %2 {
      %cst_28 = arith.constant 0.000000e+00 : f32
      %44 = vector.broadcast %cst_28 : f32 to vector<128x128xf32>
      %c0_29 = arith.constant 0 : index
      %c0_30 = arith.constant 0 : index
      %45 = vector.load %arg7[%c0_29, %c0_30] : memref<128x128xf32, #tpu.memory_space<vmem>>, vector<128x128xf32>
      tpu.vector_store %arg7[%c0_29, %c0_30], %44 {strides = array<i32>} : memref<128x128xf32, #tpu.memory_space<vmem>>, vector<128x128xf32>,
      %cst_31 = arith.constant 0.000000e+00 : f32
      %46 = vector.broadcast %cst_31 : f32 to vector<128x128xf32>
      %c0_32 = arith.constant 0 : index
      %c0_33 = arith.constant 0 : index
      %47 = vector.load %arg8[%c0_32, %c0_33] : memref<128x128xf32, #tpu.memory_space<vmem>>, vector<128x128xf32>
      tpu.vector_store %arg8[%c0_32, %c0_33], %46 {strides = array<i32>} : memref<128x128xf32, #tpu.memory_space<vmem>>, vector<128x128xf32>,
      %cst_34 = arith.constant 0.000000e+00 : f32
      %48 = vector.broadcast %cst_34 : f32 to vector<128x128xf32>
      %c0_35 = arith.constant 0 : index
      %c0_36 = arith.constant 0 : index
      %49 = vector.load %arg9[%c0_35, %c0_36] : memref<128x128xf32, #tpu.memory_space<vmem>>, vector<128x128xf32>
      tpu.vector_store %arg9[%c0_35, %c0_36], %48 {strides = array<i32>} : memref<128x128xf32, #tpu.memory_space<vmem>>, vector<128x128xf32>,
    } else {
    }
    %c0 = arith.constant 0 : index
    %c0_1 = arith.constant 0 : index
    %3 = vector.load %arg2[%c0, %c0_1] : memref<128x128xf32, #tpu.memory_space<vmem>>, vector<128x128xf32>
    %c0_2 = arith.constant 0 : index
    %c0_3 = arith.constant 0 : index
    %4 = vector.load %arg3[%c0_2, %c0_3] : memref<128x128xf32, #tpu.memory_space<vmem>>, vector<128x128xf32>
    %cst = arith.constant dense<0.000000e+00> : vector<128x128xf32>
    %5 = tpu.matmul %3, %4, %cst {dimension_numbers = #tpu.dot_dimension_numbers<[1], [0], [0], [1], [0, 0, 1, 1], [], []>} : vector<128x128xf32>, vector<128x128xf32>, vector<128x128xf32> -> vector<128x128xf32>
    %cst_4 = arith.constant 2.000000e+00 : f32
    %6 = vector.broadcast %cst_4 : f32 to vector<128x128xf32>
    %7 = arith.mulf %5, %6 : vector<128x128xf32>
    %c128_i32 = arith.constant 128 : i32
    %8 = arith.muli %arg1, %c128_i32 : i32
    %9 = tpu.iota {dimensions = array<i32: 1>} : vector<1x128xi32>
    %10 = vector.broadcast %8 : i32 to vector<1x128xi32>
    %11 = arith.addi %10, %9 : vector<1x128xi32>
    %c8_i32 = arith.constant 8 : i32
    %12 = vector.broadcast %c8_i32 : i32 to vector<1x128xi32>
    %13 = arith.cmpi slt, %11, %12 : vector<1x128xi32>
    %c0_5 = arith.constant 0 : index
    %c0_6 = arith.constant 0 : index
    %14 = vector.load %arg4[%c0_5, %c0_6] : memref<128x1xi32, #tpu.memory_space<vmem>>, vector<128x1xi32>
    %c0_7 = arith.constant 0 : index
    %c0_8 = arith.constant 0 : index
    %15 = vector.load %arg5[%c0_7, %c0_8] : memref<1x128xi32, #tpu.memory_space<vmem>>, vector<1x128xi32>
    %16 = vector.broadcast %14 : vector<128x1xi32> to vector<128x128xi32>
    %17 = vector.broadcast %15 : vector<1x128xi32> to vector<128x128xi32>
    %18 = arith.cmpi eq, %16, %17 : vector<128x128xi32>
    %19 = vector.broadcast %13 : vector<1x128xi1> to vector<128x128xi1>
    %20 = arith.andi %18, %19 : vector<128x128xi1>
    %cst_9 = arith.constant dense<true> : vector<128x128xi1>
    %21 = arith.xori %18, %cst_9 : vector<128x128xi1>
    %22 = vector.broadcast %13 : vector<1x128xi1> to vector<128x128xi1>
    %23 = arith.andi %21, %22 : vector<128x128xi1>
    %24 = math.exp %7 : vector<128x128xf32>
    %cst_10 = arith.constant 0.000000e+00 : f32
    %25 = vector.broadcast %cst_10 : f32 to vector<128x128xf32>
    %26 = arith.select %23, %24, %25 : vector<128x128xi1>, vector<128x128xf32>
    %cst_11 = arith.constant 0.000000e+00 : f32
    %27 = vector.broadcast %cst_11 : f32 to vector<128x128xf32>
    %28 = arith.select %20, %7, %27 : vector<128x128xi1>, vector<128x128xf32>
    %cst_12 = arith.constant 1.000000e+00 : f32
    %cst_13 = arith.constant 0.000000e+00 : f32
    %29 = vector.broadcast %cst_12 : f32 to vector<128x128xf32>
    %30 = vector.broadcast %cst_13 : f32 to vector<128x128xf32>
    %31 = arith.select %20, %29, %30 : vector<128x128xi1>, vector<128x128xf32>
    %c0_14 = arith.constant 0 : index
    %c0_15 = arith.constant 0 : index
    %32 = vector.load %arg7[%c0_14, %c0_15] : memref<128x128xf32, #tpu.memory_space<vmem>>, vector<128x128xf32>
    %33 = arith.addf %32, %26 : vector<128x128xf32>
    %c0_16 = arith.constant 0 : index
    %c0_17 = arith.constant 0 : index
    %34 = vector.load %arg7[%c0_16, %c0_17] : memref<128x128xf32, #tpu.memory_space<vmem>>, vector<128x128xf32>
    tpu.vector_store %arg7[%c0_16, %c0_17], %33 {strides = array<i32>} : memref<128x128xf32, #tpu.memory_space<vmem>>, vector<128x128xf32>,
    %c0_18 = arith.constant 0 : index
    %c0_19 = arith.constant 0 : index
    %35 = vector.load %arg8[%c0_18, %c0_19] : memref<128x128xf32, #tpu.memory_space<vmem>>, vector<128x128xf32>
    %36 = arith.addf %35, %28 : vector<128x128xf32>
    %c0_20 = arith.constant 0 : index
    %c0_21 = arith.constant 0 : index
    %37 = vector.load %arg8[%c0_20, %c0_21] : memref<128x128xf32, #tpu.memory_space<vmem>>, vector<128x128xf32>
    tpu.vector_store %arg8[%c0_20, %c0_21], %36 {strides = array<i32>} : memref<128x128xf32, #tpu.memory_space<vmem>>, vector<128x128xf32>,
    %c0_22 = arith.constant 0 : index
    %c0_23 = arith.constant 0 : index
    %38 = vector.load %arg9[%c0_22, %c0_23] : memref<128x128xf32, #tpu.memory_space<vmem>>, vector<128x128xf32>
    %39 = arith.addf %38, %31 : vector<128x128xf32>
    %c0_24 = arith.constant 0 : index
    %c0_25 = arith.constant 0 : index
    %40 = vector.load %arg9[%c0_24, %c0_25] : memref<128x128xf32, #tpu.memory_space<vmem>>, vector<128x128xf32>
    tpu.vector_store %arg9[%c0_24, %c0_25], %39 {strides = array<i32>} : memref<128x128xf32, #tpu.memory_space<vmem>>, vector<128x128xf32>,
    %c0_i32_26 = arith.constant 0 : i32
    %41 = arith.cmpi eq, %arg1, %c0_i32_26 : i32
    %42 = arith.extui %41 : i1 to i32
    %c0_i32_27 = arith.constant 0 : i32
    %43 = arith.cmpi ne, %42, %c0_i32_27 : i32
    scf.if %43 {
      %c0_28 = arith.constant 0 : index
      %c0_29 = arith.constant 0 : index
      %44 = vector.load %arg7[%c0_28, %c0_29] : memref<128x128xf32, #tpu.memory_space<vmem>>, vector<128x128xf32>
      %cst_30 = arith.constant dense<0.000000e+00> : vector<128xf32>
      %45 = vector.multi_reduction <add>, %44, %cst_30 [1] : vector<128x128xf32> to vector<128xf32>
      %46 = vector.shape_cast %45 : vector<128xf32> to vector<128x1xf32>
      %c0_31 = arith.constant 0 : index
      %c0_32 = arith.constant 0 : index
      %47 = vector.load %arg8[%c0_31, %c0_32] : memref<128x128xf32, #tpu.memory_space<vmem>>, vector<128x128xf32>
      %cst_33 = arith.constant dense<0.000000e+00> : vector<128xf32>
      %48 = vector.multi_reduction <add>, %47, %cst_33 [1] : vector<128x128xf32> to vector<128xf32>
      %49 = vector.shape_cast %48 : vector<128xf32> to vector<128x1xf32>
      %c0_34 = arith.constant 0 : index
      %c0_35 = arith.constant 0 : index
      %50 = vector.load %arg9[%c0_34, %c0_35] : memref<128x128xf32, #tpu.memory_space<vmem>>, vector<128x128xf32>
      %cst_36 = arith.constant dense<0.000000e+00> : vector<128xf32>
      %51 = vector.multi_reduction <add>, %50, %cst_36 [1] : vector<128x128xf32> to vector<128xf32>
      %52 = vector.shape_cast %51 : vector<128xf32> to vector<128x1xf32>
      %53 = math.log %46 : vector<128x1xf32>
      %54 = arith.mulf %53, %52 : vector<128x1xf32>
      %55 = arith.subf %49, %54 : vector<128x1xf32>
      %56 = tpu.reciprocal %52 : vector<128x1xf32> -> vector<128x1xf32>
      %57 = arith.mulf %55, %56 : vector<128x1xf32>
      %cst_37 = arith.constant 0.000000e+00 : f32
      %58 = vector.broadcast %cst_37 : f32 to vector<128x1xf32>
      %59 = arith.subf %58, %57 : vector<128x1xf32>
      %c0_38 = arith.constant 0 : index
      %c0_39 = arith.constant 0 : index
      %60 = vector.load %arg6[%c0_38, %c0_39] : memref<128x1xf32, #tpu.memory_space<vmem>>, vector<128x1xf32>
      tpu.vector_store %arg6[%c0_38, %c0_39], %59 {strides = array<i32>} : memref<128x1xf32, #tpu.memory_space<vmem>>, vector<128x1xf32>,
    } else {
    }
    return
  }
  func.func @transform_0(%arg0: i32, %arg1: i32) -> (i32, i32) {
    %c0_i32 = arith.constant 0 : i32
    %c0_i32_0 = arith.constant 0 : i32
    return %arg0, %c0_i32 : i32, i32
  }
  func.func @transform_1(%arg0: i32, %arg1: i32) -> (i32, i32) {
    %c0_i32 = arith.constant 0 : i32
    %c0_i32_0 = arith.constant 0 : i32
    return %c0_i32, %arg1 : i32, i32
  }
  func.func @transform_2(%arg0: i32, %arg1: i32) -> (i32, i32) {
    %c0_i32 = arith.constant 0 : i32
    %c0_i32_0 = arith.constant 0 : i32
    return %arg0, %c0_i32 : i32, i32
  }
  func.func @transform_3(%arg0: i32, %arg1: i32) -> (i32, i32) {
    %c0_i32 = arith.constant 0 : i32
    %c0_i32_0 = arith.constant 0 : i32
    return %c0_i32, %arg1 : i32, i32
  }
  func.func @transform_4(%arg0: i32, %arg1: i32) -> (i32, i32) {
    %c0_i32 = arith.constant 0 : i32
    %c0_i32_0 = arith.constant 0 : i32
    return %arg0, %c0_i32 : i32, i32
  }
}

</mosaic_0001>

<llo_original>
// kernel: tpu_custom_call.1
$region0: #{tpu_custom_call.1}
  #allocation0 [shape = 'u32[]', space=smem, size = 0x4, offset = 0x4, fixed_abs, tag = 'smem constant byte address 0x4 - core index']
  #allocation1 [shape = 'u32[144,128]{1,0:T(1,128)}', space=vmem, size = 0x12000, scoped, tag = 'internal scratch']
  #allocation2 [shape = 'f32[128,128]{1,0:T(8,128)}', space=vmem, size = 0x10000, scoped, tag = 'scratch operand']
  #allocation3 [shape = 'f32[128,128]{1,0:T(8,128)}', space=vmem, size = 0x10000, scoped, tag = 'scratch operand']
  #allocation4 [shape = 'f32[128,128]{1,0:T(8,128)}', space=vmem, size = 0x10000, scoped, tag = 'scratch operand']
  %s0 = inlined_call_operand.vmem [shape: f32[128,128], index: 0, kind: input, shape index: {}]
  %s1 = inlined_call_operand.hbm [shape: f32[128,128], index: 1, kind: input, shape index: {}]
  %s2 = inlined_call_operand.vmem [shape: s32[128,1], index: 2, kind: input, shape index: {}]
  %s3 = inlined_call_operand.vmem [shape: s32[1,128], index: 3, kind: input, shape index: {}]
  %s4 = inlined_call_operand.vmem [shape: f32[128,1], index: 4, kind: output, shape index: {}]
  %s5 = sld [smem:[#allocation0]]
  $region38: #{tpu_custom_call.1} parent=0
    _
  %s7 = ssub.s32 1, %s5
  %s8 = scalar_select 0, %s7, %s5
  $region1: #{tpu_custom_call.1} parent=0
    #allocation5 [shape = 'u8[65536]{0}', space=vmem, size = 0x10000, scoped, tag = 'input window, operand 1, single buffered']
    #allocation6 [shape = 's32[1]{0}', space=sflag, size = 0x4, scoped, tag = 'scoped memory for tpu_custom_call.1']
    %9 = vsyncpa [#allocation6], 0
    // Predicated region
    $region2: #{tpu_custom_call.1} parent=1 // pred_check
      _
    $region3: #{tpu_custom_call.1} parent=1 // pred_check_branch
      %11 = sbr.rel (0) target = $region5
    $region4: #{tpu_custom_call.1} parent=1 // pred_region
      _
    $region5: #{tpu_custom_call.1} parent=1 // pred_fallthru
      _
    // Predicated region
    $region6: #{tpu_custom_call.1} parent=1 // pred_check
      _
    $region7: #{tpu_custom_call.1} parent=1 // pred_check_branch
      %13 = sbr.rel (0) target = $region9
    $region8: #{tpu_custom_call.1} parent=1 // pred_region
      %s15 = ssub.s32 2048, 2048
      %16 = vsyncadd [#allocation6], %s15
      %s17 = sshll.u32 [#allocation5], 4
      %s18 = int_to_ptr.vmem [resolvable:$true] %s17
      %23 = dma.hbm_to_vmem [thread:$0]  %s1, 2048, %s18, [#allocation6], 128, 128, 8
    $region9: #{tpu_custom_call.1} parent=1 // pred_fallthru
      _
    // Predicated region
    $region10: #{tpu_custom_call.1} parent=1 // pred_check
      _
    $region11: #{tpu_custom_call.1} parent=1 // pred_check_branch
      %25 = sbr.rel (0) target = $region13
    $region12: #{tpu_custom_call.1} parent=1 // pred_region
      _
    $region13: #{tpu_custom_call.1} parent=1 // pred_fallthru
      _
    // Predicated region
    $region14: #{tpu_custom_call.1} parent=1 // pred_check
      _
    $region15: #{tpu_custom_call.1} parent=1 // pred_check_branch
      %27 = sbr.rel (0) target = $region17
    $region16: #{tpu_custom_call.1} parent=1 // pred_region
      _
    $region17: #{tpu_custom_call.1} parent=1 // pred_fallthru
      _
    // Predicated region
    $region18: #{tpu_custom_call.1} parent=1 // pred_check
      _
    $region19: #{tpu_custom_call.1} parent=1 // pred_check_branch
      %29 = sbr.rel (0) target = $region21
    $region20: #{tpu_custom_call.1} parent=1 // pred_region
      %30 = dma.done [#allocation6], 2048
    $region21: #{tpu_custom_call.1} parent=1 // pred_fallthru
      _
    %p31 = scmp.eq.s32.totalorder 0, 0
    // Predicated region
    $region22: #{tpu_custom_call.1} parent=1 // pred_check
      %p32 = pneg %p31
    $region23: #{tpu_custom_call.1} parent=1 // pred_check_branch
      %34 = sbr.rel (%p32) target = $region25
    $region24: #{tpu_custom_call.1} parent=1 // pred_region
      %35 = vst [vmem:[#allocation2] sm:$0xff] 0.0
      %36 = vst [vmem:[#allocation2 + $0x8] sm:$0xff] 0.0
      %37 = vst [vmem:[#allocation2 + $0x10] sm:$0xff] 0.0
      %38 = vst [vmem:[#allocation2 + $0x18] sm:$0xff] 0.0
      %39 = vst [vmem:[#allocation2 + $0x20] sm:$0xff] 0.0
      %40 = vst [vmem:[#allocation2 + $0x28] sm:$0xff] 0.0
      %41 = vst [vmem:[#allocation2 + $0x30] sm:$0xff] 0.0
      %42 = vst [vmem:[#allocation2 + $0x38] sm:$0xff] 0.0
      %43 = vst [vmem:[#allocation2 + $0x40] sm:$0xff] 0.0
      %44 = vst [vmem:[#allocation2 + $0x48] sm:$0xff] 0.0
      %45 = vst [vmem:[#allocation2 + $0x50] sm:$0xff] 0.0
      %46 = vst [vmem:[#allocation2 + $0x58] sm:$0xff] 0.0
      %47 = vst [vmem:[#allocation2 + $0x60] sm:$0xff] 0.0
      %48 = vst [vmem:[#allocation2 + $0x68] sm:$0xff] 0.0
      %49 = vst [vmem:[#allocation2 + $0x70] sm:$0xff] 0.0
      %50 = vst [vmem:[#allocation2 + $0x78] sm:$0xff] 0.0
      %51 = vst [vmem:[#allocation3] sm:$0xff] 0.0
      %52 = vst [vmem:[#allocation3 + $0x8] sm:$0xff] 0.0
      %53 = vst [vmem:[#allocation3 + $0x10] sm:$0xff] 0.0
      %54 = vst [vmem:[#allocation3 + $0x18] sm:$0xff] 0.0
      %55 = vst [vmem:[#allocation3 + $0x20] sm:$0xff] 0.0
      %56 = vst [vmem:[#allocation3 + $0x28] sm:$0xff] 0.0
      %57 = vst [vmem:[#allocation3 + $0x30] sm:$0xff] 0.0
      %58 = vst [vmem:[#allocation3 + $0x38] sm:$0xff] 0.0
      %59 = vst [vmem:[#allocation3 + $0x40] sm:$0xff] 0.0
      %60 = vst [vmem:[#allocation3 + $0x48] sm:$0xff] 0.0
      %61 = vst [vmem:[#allocation3 + $0x50] sm:$0xff] 0.0
      %62 = vst [vmem:[#allocation3 + $0x58] sm:$0xff] 0.0
      %63 = vst [vmem:[#allocation3 + $0x60] sm:$0xff] 0.0
      %64 = vst [vmem:[#allocation3 + $0x68] sm:$0xff] 0.0
      %65 = vst [vmem:[#allocation3 + $0x70] sm:$0xff] 0.0
      %66 = vst [vmem:[#allocation3 + $0x78] sm:$0xff] 0.0
      %67 = vst [vmem:[#allocation4] sm:$0xff] 0.0
      %68 = vst [vmem:[#allocation4 + $0x8] sm:$0xff] 0.0
      %69 = vst [vmem:[#allocation4 + $0x10] sm:$0xff] 0.0
      %70 = vst [vmem:[#allocation4 + $0x18] sm:$0xff] 0.0
      %71 = vst [vmem:[#allocation4 + $0x20] sm:$0xff] 0.0
      %72 = vst [vmem:[#allocation4 + $0x28] sm:$0xff] 0.0
      %73 = vst [vmem:[#allocation4 + $0x30] sm:$0xff] 0.0
      %74 = vst [vmem:[#allocation4 + $0x38] sm:$0xff] 0.0
      %75 = vst [vmem:[#allocation4 + $0x40] sm:$0xff] 0.0
      %76 = vst [vmem:[#allocation4 + $0x48] sm:$0xff] 0.0
      %77 = vst [vmem:[#allocation4 + $0x50] sm:$0xff] 0.0
      %78 = vst [vmem:[#allocation4 + $0x58] sm:$0xff] 0.0
      %79 = vst [vmem:[#allocation4 + $0x60] sm:$0xff] 0.0
      %80 = vst [vmem:[#allocation4 + $0x68] sm:$0xff] 0.0
      %81 = vst [vmem:[#allocation4 + $0x70] sm:$0xff] 0.0
      %82 = vst [vmem:[#allocation4 + $0x78] sm:$0xff] 0.0
    $region25: #{tpu_custom_call.1} parent=1 // pred_fallthru
      _
    %v83 = vld [vmem:[%s0] sm:$0xff]
    %v84 = vld [vmem:[%s0 + $0x8] sm:$0xff]
    %v85 = vld [vmem:[%s0 + $0x10] sm:$0xff]
    %v86 = vld [vmem:[%s0 + $0x18] sm:$0xff]
    %v87 = vld [vmem:[%s0 + $0x20] sm:$0xff]
    %v88 = vld [vmem:[%s0 + $0x28] sm:$0xff]
    %v89 = vld [vmem:[%s0 + $0x30] sm:$0xff]
    %v90 = vld [vmem:[%s0 + $0x38] sm:$0xff]
    %v91 = vld [vmem:[%s0 + $0x40] sm:$0xff]
    %v92 = vld [vmem:[%s0 + $0x48] sm:$0xff]
    %v93 = vld [vmem:[%s0 + $0x50] sm:$0xff]
    %v94 = vld [vmem:[%s0 + $0x58] sm:$0xff]
    %v95 = vld [vmem:[%s0 + $0x60] sm:$0xff]
    %v96 = vld [vmem:[%s0 + $0x68] sm:$0xff]
    %v97 = vld [vmem:[%s0 + $0x70] sm:$0xff]
    %v98 = vld [vmem:[%s0 + $0x78] sm:$0xff]
    %v99 = vld [vmem:[#allocation5] sm:$0xff]
    %v100 = vld [vmem:[#allocation5 + $0x8] sm:$0xff]
    %v101 = vld [vmem:[#allocation5 + $0x10] sm:$0xff]
    %v102 = vld [vmem:[#allocation5 + $0x18] sm:$0xff]
    %v103 = vld [vmem:[#allocation5 + $0x20] sm:$0xff]
    %v104 = vld [vmem:[#allocation5 + $0x28] sm:$0xff]
    %v105 = vld [vmem:[#allocation5 + $0x30] sm:$0xff]
    %v106 = vld [vmem:[#allocation5 + $0x38] sm:$0xff]
    %v107 = vld [vmem:[#allocation5 + $0x40] sm:$0xff]
    %v108 = vld [vmem:[#allocation5 + $0x48] sm:$0xff]
    %v109 = vld [vmem:[#allocation5 + $0x50] sm:$0xff]
    %v110 = vld [vmem:[#allocation5 + $0x58] sm:$0xff]
    %v111 = vld [vmem:[#allocation5 + $0x60] sm:$0xff]
    %v112 = vld [vmem:[#allocation5 + $0x68] sm:$0xff]
    %v113 = vld [vmem:[#allocation5 + $0x70] sm:$0xff]
    %v114 = vld [vmem:[#allocation5 + $0x78] sm:$0xff]
    %115 = vmatprep.subr.mxu0 0.0
    %116 = vmatpush1.msra.mxu0 %v99
    %117 = vmatprep.subr.mxu0 0.0
    %118 = vmatpush1.msra.mxu0 %v100
    %119 = vmatprep.subr.mxu0 0.0
    %120 = vmatpush1.msra.mxu0 %v101
    %121 = vmatprep.subr.mxu0 0.0
    %122 = vmatpush1.msra.mxu0 %v102
    %123 = vmatprep.subr.mxu0 0.0
    %124 = vmatpush1.msra.mxu0 %v103
    %125 = vmatprep.subr.mxu0 0.0
    %126 = vmatpush1.msra.mxu0 %v104
    %127 = vmatprep.subr.mxu0 0.0
    %128 = vmatpush1.msra.mxu0 %v105
    %129 = vmatprep.subr.mxu0 0.0
    %130 = vmatpush1.msra.mxu0 %v106
    %131 = vmatprep.subr.mxu0 0.0
    %132 = vmatpush1.msra.mxu0 %v107
    %133 = vmatprep.subr.mxu0 0.0
    %134 = vmatpush1.msra.mxu0 %v108
    %135 = vmatprep.subr.mxu0 0.0
    %136 = vmatpush1.msra.mxu0 %v109
    %137 = vmatprep.subr.mxu0 0.0
    %138 = vmatpush1.msra.mxu0 %v110
    %139 = vmatprep.subr.mxu0 0.0
    %140 = vmatpush1.msra.mxu0 %v111
    %141 = vmatprep.subr.mxu0 0.0
    %142 = vmatpush1.msra.mxu0 %v112
    %143 = vmatprep.subr.mxu0 0.0
    %144 = vmatpush1.msra.mxu0 %v113
    %145 = vmatprep.subr.mxu0 0.0
    %146 = vmatpush1.msra.mxu0 %v114
    %147 = vmatprep.subr.mxu0 0.0
    %148 = vmatpush1.msra.mxu0 0.0
    %149 = vmatprep.subr.mxu0 0.0
    %150 = vmatpush1.msra.mxu0 0.0
    %151 = vmatprep.subr.mxu0 0.0
    %152 = vmatpush1.msra.mxu0 0.0
    %153 = vmatprep.subr.mxu0 0.0
    %154 = vmatpush1.msra.mxu0 0.0
    %155 = vmatprep.subr.mxu0 0.0
    %156 = vmatpush1.msra.mxu0 0.0
    %157 = vmatprep.subr.mxu0 0.0
    %158 = vmatpush1.msra.mxu0 0.0
    %159 = vmatprep.subr.mxu0 0.0
    %160 = vmatpush1.msra.mxu0 0.0
    %161 = vmatprep.subr.mxu0 0.0
    %162 = vmatpush1.msra.mxu0 0.0
    %163 = vmatprep.subr.mxu0 0.0
    %164 = vmatpush1.msra.mxu0 0.0
    %165 = vmatprep.subr.mxu0 0.0
    %166 = vmatpush1.msra.mxu0 0.0
    %167 = vmatprep.subr.mxu0 0.0
    %168 = vmatpush1.msra.mxu0 0.0
    %169 = vmatprep.subr.mxu0 0.0
    %170 = vmatpush1.msra.mxu0 0.0
    %171 = vmatprep.subr.mxu0 0.0
    %172 = vmatpush1.msra.mxu0 0.0
    %173 = vmatprep.subr.mxu0 0.0
    %174 = vmatpush1.msra.mxu0 0.0
    %175 = vmatprep.subr.mxu0 0.0
    %176 = vmatpush1.msra.mxu0 0.0
    %177 = vmatprep.subr.mxu0 0.0
    %178 = vmatpush1.msra.mxu0 0.0
    %179 = vmatprep.mubr.f32.mxu0 0.0
    %180 = vmatmul.mubr.f32.gmra.mrb[0].mxu0 %v83
    %v181 = vpop.f32.mrb[0].mxu0
    %v182 = vadd.f32 0.0, %v181
    %v183 = vpop.f32.mrb[0].mxu0
    %184 = vmatprep.mubr.f32.mxu0 0.0
    %185 = vmatmul.mubr.f32.gmra.mrb[0].mxu0 %v84
    %v186 = vpop.f32.mrb[0].mxu0
    %v187 = vadd.f32 0.0, %v186
    %v188 = vpop.f32.mrb[0].mxu0
    %189 = vmatprep.mubr.f32.mxu0 0.0
    %190 = vmatmul.mubr.f32.gmra.mrb[0].mxu0 %v85
    %v191 = vpop.f32.mrb[0].mxu0
    %v192 = vadd.f32 0.0, %v191
    %v193 = vpop.f32.mrb[0].mxu0
    %194 = vmatprep.mubr.f32.mxu0 0.0
    %195 = vmatmul.mubr.f32.gmra.mrb[0].mxu0 %v86
    %v196 = vpop.f32.mrb[0].mxu0
    %v197 = vadd.f32 0.0, %v196
    %v198 = vpop.f32.mrb[0].mxu0
    %199 = vmatprep.mubr.f32.mxu0 0.0
    %200 = vmatmul.mubr.f32.gmra.mrb[0].mxu0 %v87
    %v201 = vpop.f32.mrb[0].mxu0
    %v202 = vadd.f32 0.0, %v201
    %v203 = vpop.f32.mrb[0].mxu0
    %204 = vmatprep.mubr.f32.mxu0 0.0
    %205 = vmatmul.mubr.f32.gmra.mrb[0].mxu0 %v88
    %v206 = vpop.f32.mrb[0].mxu0
    %v207 = vadd.f32 0.0, %v206
    %v208 = vpop.f32.mrb[0].mxu0
    %209 = vmatprep.mubr.f32.mxu0 0.0
    %210 = vmatmul.mubr.f32.gmra.mrb[0].mxu0 %v89
    %v211 = vpop.f32.mrb[0].mxu0
    %v212 = vadd.f32 0.0, %v211
    %v213 = vpop.f32.mrb[0].mxu0
    %214 = vmatprep.mubr.f32.mxu0 0.0
    %215 = vmatmul.mubr.f32.gmra.mrb[0].mxu0 %v90
    %v216 = vpop.f32.mrb[0].mxu0
    %v217 = vadd.f32 0.0, %v216
    %v218 = vpop.f32.mrb[0].mxu0
    %219 = vmatprep.mubr.f32.mxu0 0.0
    %220 = vmatmul.mubr.f32.gmra.mrb[0].mxu0 %v91
    %v221 = vpop.f32.mrb[0].mxu0
    %v222 = vadd.f32 0.0, %v221
    %v223 = vpop.f32.mrb[0].mxu0
    %224 = vmatprep.mubr.f32.mxu0 0.0
    %225 = vmatmul.mubr.f32.gmra.mrb[0].mxu0 %v92
    %v226 = vpop.f32.mrb[0].mxu0
    %v227 = vadd.f32 0.0, %v226
    %v228 = vpop.f32.mrb[0].mxu0
    %229 = vmatprep.mubr.f32.mxu0 0.0
    %230 = vmatmul.mubr.f32.gmra.mrb[0].mxu0 %v93
    %v231 = vpop.f32.mrb[0].mxu0
    %v232 = vadd.f32 0.0, %v231
    %v233 = vpop.f32.mrb[0].mxu0
    %234 = vmatprep.mubr.f32.mxu0 0.0
    %235 = vmatmul.mubr.f32.gmra.mrb[0].mxu0 %v94
    %v236 = vpop.f32.mrb[0].mxu0
    %v237 = vadd.f32 0.0, %v236
    %v238 = vpop.f32.mrb[0].mxu0
    %239 = vmatprep.mubr.f32.mxu0 0.0
    %240 = vmatmul.mubr.f32.gmra.mrb[0].mxu0 %v95
    %v241 = vpop.f32.mrb[0].mxu0
    %v242 = vadd.f32 0.0, %v241
    %v243 = vpop.f32.mrb[0].mxu0
    %244 = vmatprep.mubr.f32.mxu0 0.0
    %245 = vmatmul.mubr.f32.gmra.mrb[0].mxu0 %v96
    %v246 = vpop.f32.mrb[0].mxu0
    %v247 = vadd.f32 0.0, %v246
    %v248 = vpop.f32.mrb[0].mxu0
    %249 = vmatprep.mubr.f32.mxu0 0.0
    %250 = vmatmul.mubr.f32.gmra.mrb[0].mxu0 %v97
    %v251 = vpop.f32.mrb[0].mxu0
    %v252 = vadd.f32 0.0, %v251
    %v253 = vpop.f32.mrb[0].mxu0
    %254 = vmatprep.mubr.f32.mxu0 0.0
    %255 = vmatmul.mubr.f32.gmra.mrb[0].mxu0 %v98
    %v256 = vpop.f32.mrb[0].mxu0
    %v257 = vadd.f32 0.0, %v256
    %v258 = vpop.f32.mrb[0].mxu0
    %259 = vdwg.mxu0
    %v260 = vmul.f32 %v182, 2.0
    %v261 = vmul.f32 %v187, 2.0
    %v262 = vmul.f32 %v192, 2.0
    %v263 = vmul.f32 %v197, 2.0
    %v264 = vmul.f32 %v202, 2.0
    %v265 = vmul.f32 %v207, 2.0
    %v266 = vmul.f32 %v212, 2.0
    %v267 = vmul.f32 %v217, 2.0
    %v268 = vmul.f32 %v222, 2.0
    %v269 = vmul.f32 %v227, 2.0
    %v270 = vmul.f32 %v232, 2.0
    %v271 = vmul.f32 %v237, 2.0
    %v272 = vmul.f32 %v242, 2.0
    %v273 = vmul.f32 %v247, 2.0
    %v274 = vmul.f32 %v252, 2.0
    %v275 = vmul.f32 %v257, 2.0
    %s276 = smul.u32 0, 128
    %v277 = vlaneseq
    %v278 = vand.u32 %v277, 127
    %v279 = vstv %s276
    %v280 = vadd.s32 %v279, %v278
    %vm281 = vcmp.lt.s32.totalorder %v280, 8
    %v282 = vld [vmem:[%s2] sm:$0xff]
    %v283 = vld [vmem:[%s2 + $0x8] sm:$0xff]
    %v284 = vld [vmem:[%s2 + $0x10] sm:$0xff]
    %v285 = vld [vmem:[%s2 + $0x18] sm:$0xff]
    %v286 = vld [vmem:[%s2 + $0x20] sm:$0xff]
    %v287 = vld [vmem:[%s2 + $0x28] sm:$0xff]
    %v288 = vld [vmem:[%s2 + $0x30] sm:$0xff]
    %v289 = vld [vmem:[%s2 + $0x38] sm:$0xff]
    %v290 = vld [vmem:[%s2 + $0x40] sm:$0xff]
    %v291 = vld [vmem:[%s2 + $0x48] sm:$0xff]
    %v292 = vld [vmem:[%s2 + $0x50] sm:$0xff]
    %v293 = vld [vmem:[%s2 + $0x58] sm:$0xff]
    %v294 = vld [vmem:[%s2 + $0x60] sm:$0xff]
    %v295 = vld [vmem:[%s2 + $0x68] sm:$0xff]
    %v296 = vld [vmem:[%s2 + $0x70] sm:$0xff]
    %v297 = vld [vmem:[%s2 + $0x78] sm:$0xff]
    %v298 = vld [vmem:[%s3] sm:$0x1]
    %299 = vset.pattern.permute.xlu0 0
    %300 = vperm.xlu0 %299, %v282
    %v301 = vpop.permute.xlu0 %300
    %302 = vset.pattern.permute.xlu0 0
    %303 = vperm.xlu0 %302, %v283
    %v304 = vpop.permute.xlu0 %303
    %305 = vset.pattern.permute.xlu0 0
    %306 = vperm.xlu0 %305, %v284
    %v307 = vpop.permute.xlu0 %306
    %308 = vset.pattern.permute.xlu0 0
    %309 = vperm.xlu0 %308, %v285
    %v310 = vpop.permute.xlu0 %309
    %311 = vset.pattern.permute.xlu0 0
    %312 = vperm.xlu0 %311, %v286
    %v313 = vpop.permute.xlu0 %312
    %314 = vset.pattern.permute.xlu0 0
    %315 = vperm.xlu0 %314, %v287
    %v316 = vpop.permute.xlu0 %315
    %317 = vset.pattern.permute.xlu0 0
    %318 = vperm.xlu0 %317, %v288
    %v319 = vpop.permute.xlu0 %318
    %320 = vset.pattern.permute.xlu0 0
    %321 = vperm.xlu0 %320, %v289
    %v322 = vpop.permute.xlu0 %321
    %323 = vset.pattern.permute.xlu0 0
    %324 = vperm.xlu0 %323, %v290
    %v325 = vpop.permute.xlu0 %324
    %326 = vset.pattern.permute.xlu0 0
    %327 = vperm.xlu0 %326, %v291
    %v328 = vpop.permute.xlu0 %327
    %329 = vset.pattern.permute.xlu0 0
    %330 = vperm.xlu0 %329, %v292
    %v331 = vpop.permute.xlu0 %330
    %332 = vset.pattern.permute.xlu0 0
    %333 = vperm.xlu0 %332, %v293
    %v334 = vpop.permute.xlu0 %333
    %335 = vset.pattern.permute.xlu0 0
    %336 = vperm.xlu0 %335, %v294
    %v337 = vpop.permute.xlu0 %336
    %338 = vset.pattern.permute.xlu0 0
    %339 = vperm.xlu0 %338, %v295
    %v340 = vpop.permute.xlu0 %339
    %341 = vset.pattern.permute.xlu0 0
    %342 = vperm.xlu0 %341, %v296
    %v343 = vpop.permute.xlu0 %342
    %344 = vset.pattern.permute.xlu0 0
    %345 = vperm.xlu0 %344, %v297
    %v346 = vpop.permute.xlu0 %345
    %v347 = vlaneseq
    %v348 = vshrl.u32 %v347, 7
    %v349 = vsub.s32 0, %v348
    %v350 = vrot.slane %v298, %v349
    %vm351 = vcmp.eq.s32.totalorder %v301, %v350
    %vm352 = vcmp.eq.s32.totalorder %v304, %v350
    %vm353 = vcmp.eq.s32.totalorder %v307, %v350
    %vm354 = vcmp.eq.s32.totalorder %v310, %v350
    %vm355 = vcmp.eq.s32.totalorder %v313, %v350
    %vm356 = vcmp.eq.s32.totalorder %v316, %v350
    %vm357 = vcmp.eq.s32.totalorder %v319, %v350
    %vm358 = vcmp.eq.s32.totalorder %v322, %v350
    %vm359 = vcmp.eq.s32.totalorder %v325, %v350
    %vm360 = vcmp.eq.s32.totalorder %v328, %v350
    %vm361 = vcmp.eq.s32.totalorder %v331, %v350
    %vm362 = vcmp.eq.s32.totalorder %v334, %v350
    %vm363 = vcmp.eq.s32.totalorder %v337, %v350
    %vm364 = vcmp.eq.s32.totalorder %v340, %v350
    %vm365 = vcmp.eq.s32.totalorder %v343, %v350
    %vm366 = vcmp.eq.s32.totalorder %v346, %v350
    %v367 = vsel %vm281, 1, 0
    %vm368 = vcmp.eq.s32.totalorder %v367, 1
    %vm369 = vmand %vm351, %vm368
    %vm370 = vmand %vm352, %vm368
    %vm371 = vmand %vm353, %vm368
    %vm372 = vmand %vm354, %vm368
    %vm373 = vmand %vm355, %vm368
    %vm374 = vmand %vm356, %vm368
    %vm375 = vmand %vm357, %vm368
    %vm376 = vmand %vm358, %vm368
    %vm377 = vmand %vm359, %vm368
    %vm378 = vmand %vm360, %vm368
    %vm379 = vmand %vm361, %vm368
    %vm380 = vmand %vm362, %vm368
    %vm381 = vmand %vm363, %vm368
    %vm382 = vmand %vm364, %vm368
    %vm383 = vmand %vm365, %vm368
    %vm384 = vmand %vm366, %vm368
    %vm385 = vmxor %vm351, 1
    %vm386 = vmxor %vm352, 1
    %vm387 = vmxor %vm353, 1
    %vm388 = vmxor %vm354, 1
    %vm389 = vmxor %vm355, 1
    %vm390 = vmxor %vm356, 1
    %vm391 = vmxor %vm357, 1
    %vm392 = vmxor %vm358, 1
    %vm393 = vmxor %vm359, 1
    %vm394 = vmxor %vm360, 1
    %vm395 = vmxor %vm361, 1
    %vm396 = vmxor %vm362, 1
    %vm397 = vmxor %vm363, 1
    %vm398 = vmxor %vm364, 1
    %vm399 = vmxor %vm365, 1
    %vm400 = vmxor %vm366, 1
    %vm401 = vmand %vm385, %vm368
    %vm402 = vmand %vm386, %vm368
    %vm403 = vmand %vm387, %vm368
    %vm404 = vmand %vm388, %vm368
    %vm405 = vmand %vm389, %vm368
    %vm406 = vmand %vm390, %vm368
    %vm407 = vmand %vm391, %vm368
    %vm408 = vmand %vm392, %vm368
    %vm409 = vmand %vm393, %vm368
    %vm410 = vmand %vm394, %vm368
    %vm411 = vmand %vm395, %vm368
    %vm412 = vmand %vm396, %vm368
    %vm413 = vmand %vm397, %vm368
    %vm414 = vmand %vm398, %vm368
    %vm415 = vmand %vm399, %vm368
    %vm416 = vmand %vm400, %vm368
    %v417 = vmul.f32 %v260, 1.442695
    %v418 = vpow.pop %v417
    %v419 = vmul.f32 %v261, 1.442695
    %v420 = vpow.pop %v419
    %v421 = vmul.f32 %v262, 1.442695
    %v422 = vpow.pop %v421
    %v423 = vmul.f32 %v263, 1.442695
    %v424 = vpow.pop %v423
    %v425 = vmul.f32 %v264, 1.442695
    %v426 = vpow.pop %v425
    %v427 = vmul.f32 %v265, 1.442695
    %v428 = vpow.pop %v427
    %v429 = vmul.f32 %v266, 1.442695
    %v430 = vpow.pop %v429
    %v431 = vmul.f32 %v267, 1.442695
    %v432 = vpow.pop %v431
    %v433 = vmul.f32 %v268, 1.442695
    %v434 = vpow.pop %v433
    %v435 = vmul.f32 %v269, 1.442695
    %v436 = vpow.pop %v435
    %v437 = vmul.f32 %v270, 1.442695
    %v438 = vpow.pop %v437
    %v439 = vmul.f32 %v271, 1.442695
    %v440 = vpow.pop %v439
    %v441 = vmul.f32 %v272, 1.442695
    %v442 = vpow.pop %v441
    %v443 = vmul.f32 %v273, 1.442695
    %v444 = vpow.pop %v443
    %v445 = vmul.f32 %v274, 1.442695
    %v446 = vpow.pop %v445
    %v447 = vmul.f32 %v275, 1.442695
    %v448 = vpow.pop %v447
    %v449 = vsel %vm401, %v418, 0.0
    %v450 = vsel %vm402, %v420, 0.0
    %v451 = vsel %vm403, %v422, 0.0
    %v452 = vsel %vm404, %v424, 0.0
    %v453 = vsel %vm405, %v426, 0.0
    %v454 = vsel %vm406, %v428, 0.0
    %v455 = vsel %vm407, %v430, 0.0
    %v456 = vsel %vm408, %v432, 0.0
    %v457 = vsel %vm409, %v434, 0.0
    %v458 = vsel %vm410, %v436, 0.0
    %v459 = vsel %vm411, %v438, 0.0
    %v460 = vsel %vm412, %v440, 0.0
    %v461 = vsel %vm413, %v442, 0.0
    %v462 = vsel %vm414, %v444, 0.0
    %v463 = vsel %vm415, %v446, 0.0
    %v464 = vsel %vm416, %v448, 0.0
    %v465 = vsel %vm369, %v260, 0.0
    %v466 = vsel %vm370, %v261, 0.0
    %v467 = vsel %vm371, %v262, 0.0
    %v468 = vsel %vm372, %v263, 0.0
    %v469 = vsel %vm373, %v264, 0.0
    %v470 = vsel %vm374, %v265, 0.0
    %v471 = vsel %vm375, %v266, 0.0
    %v472 = vsel %vm376, %v267, 0.0
    %v473 = vsel %vm377, %v268, 0.0
    %v474 = vsel %vm378, %v269, 0.0
    %v475 = vsel %vm379, %v270, 0.0
    %v476 = vsel %vm380, %v271, 0.0
    %v477 = vsel %vm381, %v272, 0.0
    %v478 = vsel %vm382, %v273, 0.0
    %v479 = vsel %vm383, %v274, 0.0
    %v480 = vsel %vm384, %v275, 0.0
    %v481 = vsel %vm369, 1.0, 0.0
    %v482 = vsel %vm370, 1.0, 0.0
    %v483 = vsel %vm371, 1.0, 0.0
    %v484 = vsel %vm372, 1.0, 0.0
    %v485 = vsel %vm373, 1.0, 0.0
    %v486 = vsel %vm374, 1.0, 0.0
    %v487 = vsel %vm375, 1.0, 0.0
    %v488 = vsel %vm376, 1.0, 0.0
    %v489 = vsel %vm377, 1.0, 0.0
    %v490 = vsel %vm378, 1.0, 0.0
    %v491 = vsel %vm379, 1.0, 0.0
    %v492 = vsel %vm380, 1.0, 0.0
    %v493 = vsel %vm381, 1.0, 0.0
    %v494 = vsel %vm382, 1.0, 0.0
    %v495 = vsel %vm383, 1.0, 0.0
    %v496 = vsel %vm384, 1.0, 0.0
    %v497 = vld [vmem:[#allocation2] sm:$0xff]
    %v498 = vld [vmem:[#allocation2 + $0x8] sm:$0xff]
    %v499 = vld [vmem:[#allocation2 + $0x10] sm:$0xff]
    %v500 = vld [vmem:[#allocation2 + $0x18] sm:$0xff]
    %v501 = vld [vmem:[#allocation2 + $0x20] sm:$0xff]
    %v502 = vld [vmem:[#allocation2 + $0x28] sm:$0xff]
    %v503 = vld [vmem:[#allocation2 + $0x30] sm:$0xff]
    %v504 = vld [vmem:[#allocation2 + $0x38] sm:$0xff]
    %v505 = vld [vmem:[#allocation2 + $0x40] sm:$0xff]
    %v506 = vld [vmem:[#allocation2 + $0x48] sm:$0xff]
    %v507 = vld [vmem:[#allocation2 + $0x50] sm:$0xff]
    %v508 = vld [vmem:[#allocation2 + $0x58] sm:$0xff]
    %v509 = vld [vmem:[#allocation2 + $0x60] sm:$0xff]
    %v510 = vld [vmem:[#allocation2 + $0x68] sm:$0xff]
    %v511 = vld [vmem:[#allocation2 + $0x70] sm:$0xff]
    %v512 = vld [vmem:[#allocation2 + $0x78] sm:$0xff]
    %v513 = vadd.f32 %v497, %v449
    %v514 = vadd.f32 %v498, %v450
    %v515 = vadd.f32 %v499, %v451
    %v516 = vadd.f32 %v500, %v452
    %v517 = vadd.f32 %v501, %v453
    %v518 = vadd.f32 %v502, %v454
    %v519 = vadd.f32 %v503, %v455
    %v520 = vadd.f32 %v504, %v456
    %v521 = vadd.f32 %v505, %v457
    %v522 = vadd.f32 %v506, %v458
    %v523 = vadd.f32 %v507, %v459
    %v524 = vadd.f32 %v508, %v460
    %v525 = vadd.f32 %v509, %v461
    %v526 = vadd.f32 %v510, %v462
    %v527 = vadd.f32 %v511, %v463
    %v528 = vadd.f32 %v512, %v464
    %529 = vst [vmem:[#allocation2] sm:$0xff] %v513
    %530 = vst [vmem:[#allocation2 + $0x8] sm:$0xff] %v514
    %531 = vst [vmem:[#allocation2 + $0x10] sm:$0xff] %v515
    %532 = vst [vmem:[#allocation2 + $0x18] sm:$0xff] %v516
    %533 = vst [vmem:[#allocation2 + $0x20] sm:$0xff] %v517
    %534 = vst [vmem:[#allocation2 + $0x28] sm:$0xff] %v518
    %535 = vst [vmem:[#allocation2 + $0x30] sm:$0xff] %v519
    %536 = vst [vmem:[#allocation2 + $0x38] sm:$0xff] %v520
    %537 = vst [vmem:[#allocation2 + $0x40] sm:$0xff] %v521
    %538 = vst [vmem:[#allocation2 + $0x48] sm:$0xff] %v522
    %539 = vst [vmem:[#allocation2 + $0x50] sm:$0xff] %v523
    %540 = vst [vmem:[#allocation2 + $0x58] sm:$0xff] %v524
    %541 = vst [vmem:[#allocation2 + $0x60] sm:$0xff] %v525
    %542 = vst [vmem:[#allocation2 + $0x68] sm:$0xff] %v526
    %543 = vst [vmem:[#allocation2 + $0x70] sm:$0xff] %v527
    %544 = vst [vmem:[#allocation2 + $0x78] sm:$0xff] %v528
    %v545 = vld [vmem:[#allocation3] sm:$0xff]
    %v546 = vld [vmem:[#allocation3 + $0x8] sm:$0xff]
    %v547 = vld [vmem:[#allocation3 + $0x10] sm:$0xff]
    %v548 = vld [vmem:[#allocation3 + $0x18] sm:$0xff]
    %v549 = vld [vmem:[#allocation3 + $0x20] sm:$0xff]
    %v550 = vld [vmem:[#allocation3 + $0x28] sm:$0xff]
    %v551 = vld [vmem:[#allocation3 + $0x30] sm:$0xff]
    %v552 = vld [vmem:[#allocation3 + $0x38] sm:$0xff]
    %v553 = vld [vmem:[#allocation3 + $0x40] sm:$0xff]
    %v554 = vld [vmem:[#allocation3 + $0x48] sm:$0xff]
    %v555 = vld [vmem:[#allocation3 + $0x50] sm:$0xff]
    %v556 = vld [vmem:[#allocation3 + $0x58] sm:$0xff]
    %v557 = vld [vmem:[#allocation3 + $0x60] sm:$0xff]
    %v558 = vld [vmem:[#allocation3 + $0x68] sm:$0xff]
    %v559 = vld [vmem:[#allocation3 + $0x70] sm:$0xff]
    %v560 = vld [vmem:[#allocation3 + $0x78] sm:$0xff]
    %v561 = vadd.f32 %v545, %v465
    %v562 = vadd.f32 %v546, %v466
    %v563 = vadd.f32 %v547, %v467
    %v564 = vadd.f32 %v548, %v468
    %v565 = vadd.f32 %v549, %v469
    %v566 = vadd.f32 %v550, %v470
    %v567 = vadd.f32 %v551, %v471
    %v568 = vadd.f32 %v552, %v472
    %v569 = vadd.f32 %v553, %v473
    %v570 = vadd.f32 %v554, %v474
    %v571 = vadd.f32 %v555, %v475
    %v572 = vadd.f32 %v556, %v476
    %v573 = vadd.f32 %v557, %v477
    %v574 = vadd.f32 %v558, %v478
    %v575 = vadd.f32 %v559, %v479
    %v576 = vadd.f32 %v560, %v480
    %577 = vst [vmem:[#allocation3] sm:$0xff] %v561
    %578 = vst [vmem:[#allocation3 + $0x8] sm:$0xff] %v562
    %579 = vst [vmem:[#allocation3 + $0x10] sm:$0xff] %v563
    %580 = vst [vmem:[#allocation3 + $0x18] sm:$0xff] %v564
    %581 = vst [vmem:[#allocation3 + $0x20] sm:$0xff] %v565
    %582 = vst [vmem:[#allocation3 + $0x28] sm:$0xff] %v566
    %583 = vst [vmem:[#allocation3 + $0x30] sm:$0xff] %v567
    %584 = vst [vmem:[#allocation3 + $0x38] sm:$0xff] %v568
    %585 = vst [vmem:[#allocation3 + $0x40] sm:$0xff] %v569
    %586 = vst [vmem:[#allocation3 + $0x48] sm:$0xff] %v570
    %587 = vst [vmem:[#allocation3 + $0x50] sm:$0xff] %v571
    %588 = vst [vmem:[#allocation3 + $0x58] sm:$0xff] %v572
    %589 = vst [vmem:[#allocation3 + $0x60] sm:$0xff] %v573
    %590 = vst [vmem:[#allocation3 + $0x68] sm:$0xff] %v574
    %591 = vst [vmem:[#allocation3 + $0x70] sm:$0xff] %v575
    %592 = vst [vmem:[#allocation3 + $0x78] sm:$0xff] %v576
    %v593 = vld [vmem:[#allocation4] sm:$0xff]
    %v594 = vld [vmem:[#allocation4 + $0x8] sm:$0xff]
    %v595 = vld [vmem:[#allocation4 + $0x10] sm:$0xff]
    %v596 = vld [vmem:[#allocation4 + $0x18] sm:$0xff]
    %v597 = vld [vmem:[#allocation4 + $0x20] sm:$0xff]
    %v598 = vld [vmem:[#allocation4 + $0x28] sm:$0xff]
    %v599 = vld [vmem:[#allocation4 + $0x30] sm:$0xff]
    %v600 = vld [vmem:[#allocation4 + $0x38] sm:$0xff]
    %v601 = vld [vmem:[#allocation4 + $0x40] sm:$0xff]
    %v602 = vld [vmem:[#allocation4 + $0x48] sm:$0xff]
    %v603 = vld [vmem:[#allocation4 + $0x50] sm:$0xff]
    %v604 = vld [vmem:[#allocation4 + $0x58] sm:$0xff]
    %v605 = vld [vmem:[#allocation4 + $0x60] sm:$0xff]
    %v606 = vld [vmem:[#allocation4 + $0x68] sm:$0xff]
    %v607 = vld [vmem:[#allocation4 + $0x70] sm:$0xff]
    %v608 = vld [vmem:[#allocation4 + $0x78] sm:$0xff]
    %v609 = vadd.f32 %v593, %v481
    %v610 = vadd.f32 %v594, %v482
    %v611 = vadd.f32 %v595, %v483
    %v612 = vadd.f32 %v596, %v484
    %v613 = vadd.f32 %v597, %v485
    %v614 = vadd.f32 %v598, %v486
    %v615 = vadd.f32 %v599, %v487
    %v616 = vadd.f32 %v600, %v488
    %v617 = vadd.f32 %v601, %v489
    %v618 = vadd.f32 %v602, %v490
    %v619 = vadd.f32 %v603, %v491
    %v620 = vadd.f32 %v604, %v492
    %v621 = vadd.f32 %v605, %v493
    %v622 = vadd.f32 %v606, %v494
    %v623 = vadd.f32 %v607, %v495
    %v624 = vadd.f32 %v608, %v496
    %625 = vst [vmem:[#allocation4] sm:$0xff] %v609
    %626 = vst [vmem:[#allocation4 + $0x8] sm:$0xff] %v610
    %627 = vst [vmem:[#allocation4 + $0x10] sm:$0xff] %v611
    %628 = vst [vmem:[#allocation4 + $0x18] sm:$0xff] %v612
    %629 = vst [vmem:[#allocation4 + $0x20] sm:$0xff] %v613
    %630 = vst [vmem:[#allocation4 + $0x28] sm:$0xff] %v614
    %631 = vst [vmem:[#allocation4 + $0x30] sm:$0xff] %v615
    %632 = vst [vmem:[#allocation4 + $0x38] sm:$0xff] %v616
    %633 = vst [vmem:[#allocation4 + $0x40] sm:$0xff] %v617
    %634 = vst [vmem:[#allocation4 + $0x48] sm:$0xff] %v618
    %635 = vst [vmem:[#allocation4 + $0x50] sm:$0xff] %v619
    %636 = vst [vmem:[#allocation4 + $0x58] sm:$0xff] %v620
    %637 = vst [vmem:[#allocation4 + $0x60] sm:$0xff] %v621
    %638 = vst [vmem:[#allocation4 + $0x68] sm:$0xff] %v622
    %639 = vst [vmem:[#allocation4 + $0x70] sm:$0xff] %v623
    %640 = vst [vmem:[#allocation4 + $0x78] sm:$0xff] %v624
    // Predicated region
    $region26: #{tpu_custom_call.1} parent=1 // pred_check
      %p641 = pneg %p31
    $region27: #{tpu_custom_call.1} parent=1 // pred_check_branch
      %643 = sbr.rel (%p641) target = $region29
    $region28: #{tpu_custom_call.1} parent=1 // pred_region
      %v644 = vld [vmem:[#allocation2] sm:$0xff]
      %v645 = vld [vmem:[#allocation2 + $0x8] sm:$0xff]
      %v646 = vld [vmem:[#allocation2 + $0x10] sm:$0xff]
      %v647 = vld [vmem:[#allocation2 + $0x18] sm:$0xff]
      %v648 = vld [vmem:[#allocation2 + $0x20] sm:$0xff]
      %v649 = vld [vmem:[#allocation2 + $0x28] sm:$0xff]
      %v650 = vld [vmem:[#allocation2 + $0x30] sm:$0xff]
      %v651 = vld [vmem:[#allocation2 + $0x38] sm:$0xff]
      %v652 = vld [vmem:[#allocation2 + $0x40] sm:$0xff]
      %v653 = vld [vmem:[#allocation2 + $0x48] sm:$0xff]
      %v654 = vld [vmem:[#allocation2 + $0x50] sm:$0xff]
      %v655 = vld [vmem:[#allocation2 + $0x58] sm:$0xff]
      %v656 = vld [vmem:[#allocation2 + $0x60] sm:$0xff]
      %v657 = vld [vmem:[#allocation2 + $0x68] sm:$0xff]
      %v658 = vld [vmem:[#allocation2 + $0x70] sm:$0xff]
      %v659 = vld [vmem:[#allocation2 + $0x78] sm:$0xff]
      %660 = vadd.xlane.f32.xlu0 %v644
      %v661 = vpop.xlane.xlu0 %660
      %662 = vadd.xlane.f32.xlu0 %v645
      %v663 = vpop.xlane.xlu0 %662
      %664 = vadd.xlane.f32.xlu0 %v646
      %v665 = vpop.xlane.xlu0 %664
      %666 = vadd.xlane.f32.xlu0 %v647
      %v667 = vpop.xlane.xlu0 %666
      %668 = vadd.xlane.f32.xlu0 %v648
      %v669 = vpop.xlane.xlu0 %668
      %670 = vadd.xlane.f32.xlu0 %v649
      %v671 = vpop.xlane.xlu0 %670
      %672 = vadd.xlane.f32.xlu0 %v650
      %v673 = vpop.xlane.xlu0 %672
      %674 = vadd.xlane.f32.xlu0 %v651
      %v675 = vpop.xlane.xlu0 %674
      %676 = vadd.xlane.f32.xlu0 %v652
      %v677 = vpop.xlane.xlu0 %676
      %678 = vadd.xlane.f32.xlu0 %v653
      %v679 = vpop.xlane.xlu0 %678
      %680 = vadd.xlane.f32.xlu0 %v654
      %v681 = vpop.xlane.xlu0 %680
      %682 = vadd.xlane.f32.xlu0 %v655
      %v683 = vpop.xlane.xlu0 %682
      %684 = vadd.xlane.f32.xlu0 %v656
      %v685 = vpop.xlane.xlu0 %684
      %686 = vadd.xlane.f32.xlu0 %v657
      %v687 = vpop.xlane.xlu0 %686
      %688 = vadd.xlane.f32.xlu0 %v658
      %v689 = vpop.xlane.xlu0 %688
      %690 = vadd.xlane.f32.xlu0 %v659
      %v691 = vpop.xlane.xlu0 %690
      %v692 = vld [vmem:[#allocation3] sm:$0xff]
      %v693 = vld [vmem:[#allocation3 + $0x8] sm:$0xff]
      %v694 = vld [vmem:[#allocation3 + $0x10] sm:$0xff]
      %v695 = vld [vmem:[#allocation3 + $0x18] sm:$0xff]
      %v696 = vld [vmem:[#allocation3 + $0x20] sm:$0xff]
      %v697 = vld [vmem:[#allocation3 + $0x28] sm:$0xff]
      %v698 = vld [vmem:[#allocation3 + $0x30] sm:$0xff]
      %v699 = vld [vmem:[#allocation3 + $0x38] sm:$0xff]
      %v700 = vld [vmem:[#allocation3 + $0x40] sm:$0xff]
      %v701 = vld [vmem:[#allocation3 + $0x48] sm:$0xff]
      %v702 = vld [vmem:[#allocation3 + $0x50] sm:$0xff]
      %v703 = vld [vmem:[#allocation3 + $0x58] sm:$0xff]
      %v704 = vld [vmem:[#allocation3 + $0x60] sm:$0xff]
      %v705 = vld [vmem:[#allocation3 + $0x68] sm:$0xff]
      %v706 = vld [vmem:[#allocation3 + $0x70] sm:$0xff]
      %v707 = vld [vmem:[#allocation3 + $0x78] sm:$0xff]
      %708 = vadd.xlane.f32.xlu0 %v692
      %v709 = vpop.xlane.xlu0 %708
      %710 = vadd.xlane.f32.xlu0 %v693
      %v711 = vpop.xlane.xlu0 %710
      %712 = vadd.xlane.f32.xlu0 %v694
      %v713 = vpop.xlane.xlu0 %712
      %714 = vadd.xlane.f32.xlu0 %v695
      %v715 = vpop.xlane.xlu0 %714
      %716 = vadd.xlane.f32.xlu0 %v696
      %v717 = vpop.xlane.xlu0 %716
      %718 = vadd.xlane.f32.xlu0 %v697
      %v719 = vpop.xlane.xlu0 %718
      %720 = vadd.xlane.f32.xlu0 %v698
      %v721 = vpop.xlane.xlu0 %720
      %722 = vadd.xlane.f32.xlu0 %v699
      %v723 = vpop.xlane.xlu0 %722
      %724 = vadd.xlane.f32.xlu0 %v700
      %v725 = vpop.xlane.xlu0 %724
      %726 = vadd.xlane.f32.xlu0 %v701
      %v727 = vpop.xlane.xlu0 %726
      %728 = vadd.xlane.f32.xlu0 %v702
      %v729 = vpop.xlane.xlu0 %728
      %730 = vadd.xlane.f32.xlu0 %v703
      %v731 = vpop.xlane.xlu0 %730
      %732 = vadd.xlane.f32.xlu0 %v704
      %v733 = vpop.xlane.xlu0 %732
      %734 = vadd.xlane.f32.xlu0 %v705
      %v735 = vpop.xlane.xlu0 %734
      %736 = vadd.xlane.f32.xlu0 %v706
      %v737 = vpop.xlane.xlu0 %736
      %738 = vadd.xlane.f32.xlu0 %v707
      %v739 = vpop.xlane.xlu0 %738
      %v740 = vld [vmem:[#allocation4] sm:$0xff]
      %v741 = vld [vmem:[#allocation4 + $0x8] sm:$0xff]
      %v742 = vld [vmem:[#allocation4 + $0x10] sm:$0xff]
      %v743 = vld [vmem:[#allocation4 + $0x18] sm:$0xff]
      %v744 = vld [vmem:[#allocation4 + $0x20] sm:$0xff]
      %v745 = vld [vmem:[#allocation4 + $0x28] sm:$0xff]
      %v746 = vld [vmem:[#allocation4 + $0x30] sm:$0xff]
      %v747 = vld [vmem:[#allocation4 + $0x38] sm:$0xff]
      %v748 = vld [vmem:[#allocation4 + $0x40] sm:$0xff]
      %v749 = vld [vmem:[#allocation4 + $0x48] sm:$0xff]
      %v750 = vld [vmem:[#allocation4 + $0x50] sm:$0xff]
      %v751 = vld [vmem:[#allocation4 + $0x58] sm:$0xff]
      %v752 = vld [vmem:[#allocation4 + $0x60] sm:$0xff]
      %v753 = vld [vmem:[#allocation4 + $0x68] sm:$0xff]
      %v754 = vld [vmem:[#allocation4 + $0x70] sm:$0xff]
      %v755 = vld [vmem:[#allocation4 + $0x78] sm:$0xff]
      %756 = vadd.xlane.f32.xlu0 %v740
      %v757 = vpop.xlane.xlu0 %756
      %758 = vadd.xlane.f32.xlu0 %v741
      %v759 = vpop.xlane.xlu0 %758
      %760 = vadd.xlane.f32.xlu0 %v742
      %v761 = vpop.xlane.xlu0 %760
      %762 = vadd.xlane.f32.xlu0 %v743
      %v763 = vpop.xlane.xlu0 %762
      %764 = vadd.xlane.f32.xlu0 %v744
      %v765 = vpop.xlane.xlu0 %764
      %766 = vadd.xlane.f32.xlu0 %v745
      %v767 = vpop.xlane.xlu0 %766
      %768 = vadd.xlane.f32.xlu0 %v746
      %v769 = vpop.xlane.xlu0 %768
      %770 = vadd.xlane.f32.xlu0 %v747
      %v771 = vpop.xlane.xlu0 %770
      %772 = vadd.xlane.f32.xlu0 %v748
      %v773 = vpop.xlane.xlu0 %772
      %774 = vadd.xlane.f32.xlu0 %v749
      %v775 = vpop.xlane.xlu0 %774
      %776 = vadd.xlane.f32.xlu0 %v750
      %v777 = vpop.xlane.xlu0 %776
      %778 = vadd.xlane.f32.xlu0 %v751
      %v779 = vpop.xlane.xlu0 %778
      %780 = vadd.xlane.f32.xlu0 %v752
      %v781 = vpop.xlane.xlu0 %780
      %782 = vadd.xlane.f32.xlu0 %v753
      %v783 = vpop.xlane.xlu0 %782
      %784 = vadd.xlane.f32.xlu0 %v754
      %v785 = vpop.xlane.xlu0 %784
      %786 = vadd.xlane.f32.xlu0 %v755
      %v787 = vpop.xlane.xlu0 %786
      %v788 = vlog2.pop %v661
      %v789 = vmul.f32 %v788, 0.6931472
      %v790 = vlog2.pop %v663
      %v791 = vmul.f32 %v790, 0.6931472
      %v792 = vlog2.pop %v665
      %v793 = vmul.f32 %v792, 0.6931472
      %v794 = vlog2.pop %v667
      %v795 = vmul.f32 %v794, 0.6931472
      %v796 = vlog2.pop %v669
      %v797 = vmul.f32 %v796, 0.6931472
      %v798 = vlog2.pop %v671
      %v799 = vmul.f32 %v798, 0.6931472
      %v800 = vlog2.pop %v673
      %v801 = vmul.f32 %v800, 0.6931472
      %v802 = vlog2.pop %v675
      %v803 = vmul.f32 %v802, 0.6931472
      %v804 = vlog2.pop %v677
      %v805 = vmul.f32 %v804, 0.6931472
      %v806 = vlog2.pop %v679
      %v807 = vmul.f32 %v806, 0.6931472
      %v808 = vlog2.pop %v681
      %v809 = vmul.f32 %v808, 0.6931472
      %v810 = vlog2.pop %v683
      %v811 = vmul.f32 %v810, 0.6931472
      %v812 = vlog2.pop %v685
      %v813 = vmul.f32 %v812, 0.6931472
      %v814 = vlog2.pop %v687
      %v815 = vmul.f32 %v814, 0.6931472
      %v816 = vlog2.pop %v689
      %v817 = vmul.f32 %v816, 0.6931472
      %v818 = vlog2.pop %v691
      %v819 = vmul.f32 %v818, 0.6931472
      %v820 = vmul.f32 %v789, %v757
      %v821 = vmul.f32 %v791, %v759
      %v822 = vmul.f32 %v793, %v761
      %v823 = vmul.f32 %v795, %v763
      %v824 = vmul.f32 %v797, %v765
      %v825 = vmul.f32 %v799, %v767
      %v826 = vmul.f32 %v801, %v769
      %v827 = vmul.f32 %v803, %v771
      %v828 = vmul.f32 %v805, %v773
      %v829 = vmul.f32 %v807, %v775
      %v830 = vmul.f32 %v809, %v777
      %v831 = vmul.f32 %v811, %v779
      %v832 = vmul.f32 %v813, %v781
      %v833 = vmul.f32 %v815, %v783
      %v834 = vmul.f32 %v817, %v785
      %v835 = vmul.f32 %v819, %v787
      %v836 = vsub.f32 %v709, %v820
      %v837 = vsub.f32 %v711, %v821
      %v838 = vsub.f32 %v713, %v822
      %v839 = vsub.f32 %v715, %v823
      %v840 = vsub.f32 %v717, %v824
      %v841 = vsub.f32 %v719, %v825
      %v842 = vsub.f32 %v721, %v826
      %v843 = vsub.f32 %v723, %v827
      %v844 = vsub.f32 %v725, %v828
      %v845 = vsub.f32 %v727, %v829
      %v846 = vsub.f32 %v729, %v830
      %v847 = vsub.f32 %v731, %v831
      %v848 = vsub.f32 %v733, %v832
      %v849 = vsub.f32 %v735, %v833
      %v850 = vsub.f32 %v737, %v834
      %v851 = vsub.f32 %v739, %v835
      %v852 = vrcp.pop %v757
      %v853 = vrcp.pop %v759
      %v854 = vrcp.pop %v761
      %v855 = vrcp.pop %v763
      %v856 = vrcp.pop %v765
      %v857 = vrcp.pop %v767
      %v858 = vrcp.pop %v769
      %v859 = vrcp.pop %v771
      %v860 = vrcp.pop %v773
      %v861 = vrcp.pop %v775
      %v862 = vrcp.pop %v777
      %v863 = vrcp.pop %v779
      %v864 = vrcp.pop %v781
      %v865 = vrcp.pop %v783
      %v866 = vrcp.pop %v785
      %v867 = vrcp.pop %v787
      %v868 = vmul.f32 %v836, %v852
      %v869 = vmul.f32 %v837, %v853
      %v870 = vmul.f32 %v838, %v854
      %v871 = vmul.f32 %v839, %v855
      %v872 = vmul.f32 %v840, %v856
      %v873 = vmul.f32 %v841, %v857
      %v874 = vmul.f32 %v842, %v858
      %v875 = vmul.f32 %v843, %v859
      %v876 = vmul.f32 %v844, %v860
      %v877 = vmul.f32 %v845, %v861
      %v878 = vmul.f32 %v846, %v862
      %v879 = vmul.f32 %v847, %v863
      %v880 = vmul.f32 %v848, %v864
      %v881 = vmul.f32 %v849, %v865
      %v882 = vmul.f32 %v850, %v866
      %v883 = vmul.f32 %v851, %v867
      %v884 = vsub.f32 0.0, %v868
      %v885 = vsub.f32 0.0, %v869
      %v886 = vsub.f32 0.0, %v870
      %v887 = vsub.f32 0.0, %v871
      %v888 = vsub.f32 0.0, %v872
      %v889 = vsub.f32 0.0, %v873
      %v890 = vsub.f32 0.0, %v874
      %v891 = vsub.f32 0.0, %v875
      %v892 = vsub.f32 0.0, %v876
      %v893 = vsub.f32 0.0, %v877
      %v894 = vsub.f32 0.0, %v878
      %v895 = vsub.f32 0.0, %v879
      %v896 = vsub.f32 0.0, %v880
      %v897 = vsub.f32 0.0, %v881
      %v898 = vsub.f32 0.0, %v882
      %v899 = vsub.f32 0.0, %v883
      %vm900 = vcmask 7168
      %901 = vst.msk [vmem:[%s4] sm:$0xff] %vm900, %v884
      %902 = vst.msk [vmem:[%s4 + $0x8] sm:$0xff] %vm900, %v885
      %903 = vst.msk [vmem:[%s4 + $0x10] sm:$0xff] %vm900, %v886
      %904 = vst.msk [vmem:[%s4 + $0x18] sm:$0xff] %vm900, %v887
      %905 = vst.msk [vmem:[%s4 + $0x20] sm:$0xff] %vm900, %v888
      %906 = vst.msk [vmem:[%s4 + $0x28] sm:$0xff] %vm900, %v889
      %907 = vst.msk [vmem:[%s4 + $0x30] sm:$0xff] %vm900, %v890
      %908 = vst.msk [vmem:[%s4 + $0x38] sm:$0xff] %vm900, %v891
      %909 = vst.msk [vmem:[%s4 + $0x40] sm:$0xff] %vm900, %v892
      %910 = vst.msk [vmem:[%s4 + $0x48] sm:$0xff] %vm900, %v893
      %911 = vst.msk [vmem:[%s4 + $0x50] sm:$0xff] %vm900, %v894
      %912 = vst.msk [vmem:[%s4 + $0x58] sm:$0xff] %vm900, %v895
      %913 = vst.msk [vmem:[%s4 + $0x60] sm:$0xff] %vm900, %v896
      %914 = vst.msk [vmem:[%s4 + $0x68] sm:$0xff] %vm900, %v897
      %915 = vst.msk [vmem:[%s4 + $0x70] sm:$0xff] %vm900, %v898
      %916 = vst.msk [vmem:[%s4 + $0x78] sm:$0xff] %vm900, %v899
    $region29: #{tpu_custom_call.1} parent=1 // pred_fallthru
      _
    // Predicated region
    $region30: #{tpu_custom_call.1} parent=1 // pred_check
      _
    $region31: #{tpu_custom_call.1} parent=1 // pred_check_branch
      %918 = sbr.rel (0) target = $region33
    $region32: #{tpu_custom_call.1} parent=1 // pred_region
      _
    $region33: #{tpu_custom_call.1} parent=1 // pred_fallthru
      _
    // Predicated region
    $region34: #{tpu_custom_call.1} parent=1 // pred_check
      _
    $region35: #{tpu_custom_call.1} parent=1 // pred_check_branch
      %920 = sbr.rel (0) target = $region37
    $region36: #{tpu_custom_call.1} parent=1 // pred_region
      _
    $region37: #{tpu_custom_call.1} parent=1 // pred_fallthru
      _
    %921 = vsyncpa [#allocation6], 1

</llo_original>
